<compile_context>
chip_gen: v7x
topology: tpu7x:2x2x1
jax: 0.10.0
libtpu: 0.0.40
codegen_flags: <defaults>
</compile_context>

<pallas_src>
import functools

import jax
import jax.numpy as jnp
from jax.experimental import pallas as pl
from jax.experimental.pallas import tpu as pltpu


def _n_to_n_kernel(w1_ref, w2_ref, x1_ref, x2_ref, o1_ref, o2_ref, *, c_out, c_in):
    # w*_ref : (c_out, c_in) f32 in SMEM (scalar reads, resident across grid).
    # x*_ref : (1, C, T) f32 VMEM block (channels on sublanes, T on lanes).
    # o*_ref : (1, C, T) f32 VMEM block.
    # 1x1 conv == per-pixel channel mix: unrolled 3x3 = 9 VPU FMAs per conv.
    for co in range(c_out):
        a1 = w1_ref[co, 0] * x1_ref[0, 0:1, :]
        a2 = w2_ref[co, 0] * x2_ref[0, 0:1, :]
        for ci in range(1, c_in):
            a1 = a1 + w1_ref[co, ci] * x1_ref[0, ci:ci + 1, :]
            a2 = a2 + w2_ref[co, ci] * x2_ref[0, ci:ci + 1, :]
        o1_ref[0, co:co + 1, :] = a1
        o2_ref[0, co:co + 1, :] = a2


def n_to_n_forward(x1, x2, w1, w2, *, lane_tile=16384):
    """x1, x2: (N, C, H, W) float32 NCHW; w1, w2: (C_out, C_in, 1, 1)."""
    N, C, H, W = x1.shape
    c_out = w1.shape[0]
    hw = H * W

    # Free views: NCHW -> (N, C, H*W); weights -> (C_out, C_in).
    x1f = x1.reshape(N, C, hw)
    x2f = x2.reshape(N, C, hw)
    w1m = w1.reshape(c_out, C)
    w2m = w2.reshape(c_out, C)

    # Lane-axis tile: multiple of 128 (lane-dense vst), capped so that
    # 4 streams x 2 pipeline buffers x 8 (padded sublanes) x t x 4B stays a
    # few MiB — comfortably inside v7x's 32 MiB default scoped VMEM.
    if hw <= lane_tile:
        t = hw  # full extent is always a legal block dim
    else:
        t = max(128, (lane_tile // 128) * 128)
    grid = (N, pl.cdiv(hw, t))

    x_spec = pl.BlockSpec((1, C, t), lambda n, j: (n, 0, j))
    o_spec = pl.BlockSpec((1, c_out, t), lambda n, j: (n, 0, j))
    w_spec = pl.BlockSpec(memory_space=pltpu.MemorySpace.SMEM)

    itemsize = jnp.dtype(x1.dtype).itemsize
    cost = pl.CostEstimate(
        flops=2 * 2 * N * hw * c_out * C,                    # 2 convs, mul+add
        transcendentals=0,
        bytes_accessed=4 * N * C * hw * itemsize + 2 * c_out * C * 4,
    )

    kernel = functools.partial(_n_to_n_kernel, c_out=c_out, c_in=C)

    y1f, y2f = pl.pallas_call(
        kernel,
        out_shape=(
            jax.ShapeDtypeStruct((N, c_out, hw), x1.dtype),
            jax.ShapeDtypeStruct((N, c_out, hw), x2.dtype),
        ),
        grid=grid,
        in_specs=[w_spec, w_spec, x_spec, x_spec],
        out_specs=(o_spec, o_spec),
        compiler_params=pltpu.CompilerParams(
            dimension_semantics=("parallel", "parallel"),
        ),
        cost_estimate=cost,
    )(w1m, w2m, x1f, x2f)

    # Free views back to NCHW.
    return y1f.reshape(N, c_out, H, W), y2f.reshape(N, c_out, H, W)


if __name__ == "__main__":
    key = jax.random.PRNGKey(0)
    k1, k2, k3, k4 = jax.random.split(key, 4)

    N, C, H, W = 2, 3, 16, 16
    x1 = jax.random.normal(k1, (N, C, H, W), dtype=jnp.float32)
    x2 = jax.random.normal(k2, (N, C, H, W), dtype=jnp.float32)

    # Deterministic parameter init (Conv2d(3,3,1,1,bias=False) shapes).
    w1 = jax.random.normal(k3, (3, 3, 1, 1), dtype=jnp.float32) * 0.1
    w2 = jax.random.normal(k4, (3, 3, 1, 1), dtype=jnp.float32) * 0.1

    y1, y2 = n_to_n_forward(x1, x2, w1, w2)
    jax.block_until_ready((y1, y2))

    # Pure-JAX reference check (1x1 conv == einsum over channels).
    r1 = jnp.einsum("oc,nchw->nohw", w1.reshape(3, 3), x1)
    r2 = jnp.einsum("oc,nchw->nohw", w2.reshape(3, 3), x2)
    assert y1.shape == (N, 3, H, W) and y2.shape == (N, 3, H, W)
    assert jnp.allclose(y1, r1, atol=1e-5), "conv1 mismatch"
    assert jnp.allclose(y2, r2, atol=1e-5), "conv2 mismatch"

    print("KERNEL_OK")
</pallas_src>

<mosaic_0001>
module attributes {stable_mosaic.version = 11 : i64} {
  func.func @_n_to_n_kernel(%arg0: i32, %arg1: i32, %arg2: memref<3x3xf32, #tpu.memory_space<smem>>, %arg3: memref<3x3xf32, #tpu.memory_space<smem>>, %arg4: memref<1x3x256xf32, #tpu.memory_space<vmem>>, %arg5: memref<1x3x256xf32, #tpu.memory_space<vmem>>, %arg6: memref<1x3x256xf32, #tpu.memory_space<vmem>>, %arg7: memref<1x3x256xf32, #tpu.memory_space<vmem>>) attributes {dimension_semantics = [#tpu.dimension_semantics<parallel>, #tpu.dimension_semantics<parallel>], iteration_bounds = array<i64: 2, 1>, scalar_prefetch = 0 : i64, scratch_operands = 0 : i64, tpu.core_type = #tpu.core_type<tc>, window_params = [{transform_indices = @transform_0, window_bounds = array<i64: 3, 3>}, {transform_indices = @transform_1, window_bounds = array<i64: 3, 3>}, {transform_indices = @transform_2, window_bounds = array<i64: 1, 3, 256>}, {transform_indices = @transform_3, window_bounds = array<i64: 1, 3, 256>}, {transform_indices = @transform_4, window_bounds = array<i64: 1, 3, 256>}, {transform_indices = @transform_5, window_bounds = array<i64: 1, 3, 256>}]} {
    %c0 = arith.constant 0 : index
    %c0_0 = arith.constant 0 : index
    %0 = memref.load %arg2[%c0, %c0_0] : memref<3x3xf32, #tpu.memory_space<smem>>
    %c0_1 = arith.constant 0 : index
    %c0_2 = arith.constant 0 : index
    %c0_3 = arith.constant 0 : index
    %1 = vector.load %arg4[%c0_1, %c0_2, %c0_3] : memref<1x3x256xf32, #tpu.memory_space<vmem>>, vector<1x1x256xf32>
    %2 = vector.shape_cast %1 : vector<1x1x256xf32> to vector<1x256xf32>
    %3 = vector.broadcast %0 : f32 to vector<1x256xf32>
    %4 = arith.mulf %3, %2 : vector<1x256xf32>
    %c0_4 = arith.constant 0 : index
    %c0_5 = arith.constant 0 : index
    %5 = memref.load %arg3[%c0_4, %c0_5] : memref<3x3xf32, #tpu.memory_space<smem>>
    %c0_6 = arith.constant 0 : index
    %c0_7 = arith.constant 0 : index
    %c0_8 = arith.constant 0 : index
    %6 = vector.load %arg5[%c0_6, %c0_7, %c0_8] : memref<1x3x256xf32, #tpu.memory_space<vmem>>, vector<1x1x256xf32>
    %7 = vector.shape_cast %6 : vector<1x1x256xf32> to vector<1x256xf32>
    %8 = vector.broadcast %5 : f32 to vector<1x256xf32>
    %9 = arith.mulf %8, %7 : vector<1x256xf32>
    %c0_9 = arith.constant 0 : index
    %c1 = arith.constant 1 : index
    %10 = memref.load %arg2[%c0_9, %c1] : memref<3x3xf32, #tpu.memory_space<smem>>
    %c0_10 = arith.constant 0 : index
    %c1_11 = arith.constant 1 : index
    %c0_12 = arith.constant 0 : index
    %11 = vector.load %arg4[%c0_10, %c1_11, %c0_12] : memref<1x3x256xf32, #tpu.memory_space<vmem>>, vector<1x1x256xf32>
    %12 = vector.shape_cast %11 : vector<1x1x256xf32> to vector<1x256xf32>
    %13 = vector.broadcast %10 : f32 to vector<1x256xf32>
    %14 = arith.mulf %13, %12 : vector<1x256xf32>
    %15 = arith.addf %4, %14 : vector<1x256xf32>
    %c0_13 = arith.constant 0 : index
    %c1_14 = arith.constant 1 : index
    %16 = memref.load %arg3[%c0_13, %c1_14] : memref<3x3xf32, #tpu.memory_space<smem>>
    %c0_15 = arith.constant 0 : index
    %c1_16 = arith.constant 1 : index
    %c0_17 = arith.constant 0 : index
    %17 = vector.load %arg5[%c0_15, %c1_16, %c0_17] : memref<1x3x256xf32, #tpu.memory_space<vmem>>, vector<1x1x256xf32>
    %18 = vector.shape_cast %17 : vector<1x1x256xf32> to vector<1x256xf32>
    %19 = vector.broadcast %16 : f32 to vector<1x256xf32>
    %20 = arith.mulf %19, %18 : vector<1x256xf32>
    %21 = arith.addf %9, %20 : vector<1x256xf32>
    %c0_18 = arith.constant 0 : index
    %c2 = arith.constant 2 : index
    %22 = memref.load %arg2[%c0_18, %c2] : memref<3x3xf32, #tpu.memory_space<smem>>
    %c0_19 = arith.constant 0 : index
    %c2_20 = arith.constant 2 : index
    %c0_21 = arith.constant 0 : index
    %23 = vector.load %arg4[%c0_19, %c2_20, %c0_21] : memref<1x3x256xf32, #tpu.memory_space<vmem>>, vector<1x1x256xf32>
    %24 = vector.shape_cast %23 : vector<1x1x256xf32> to vector<1x256xf32>
    %25 = vector.broadcast %22 : f32 to vector<1x256xf32>
    %26 = arith.mulf %25, %24 : vector<1x256xf32>
    %27 = arith.addf %15, %26 : vector<1x256xf32>
    %c0_22 = arith.constant 0 : index
    %c2_23 = arith.constant 2 : index
    %28 = memref.load %arg3[%c0_22, %c2_23] : memref<3x3xf32, #tpu.memory_space<smem>>
    %c0_24 = arith.constant 0 : index
    %c2_25 = arith.constant 2 : index
    %c0_26 = arith.constant 0 : index
    %29 = vector.load %arg5[%c0_24, %c2_25, %c0_26] : memref<1x3x256xf32, #tpu.memory_space<vmem>>, vector<1x1x256xf32>
    %30 = vector.shape_cast %29 : vector<1x1x256xf32> to vector<1x256xf32>
    %31 = vector.broadcast %28 : f32 to vector<1x256xf32>
    %32 = arith.mulf %31, %30 : vector<1x256xf32>
    %33 = arith.addf %21, %32 : vector<1x256xf32>
    %c0_27 = arith.constant 0 : index
    %c0_28 = arith.constant 0 : index
    %c0_29 = arith.constant 0 : index
    %34 = vector.load %arg6[%c0_27, %c0_28, %c0_29] : memref<1x3x256xf32, #tpu.memory_space<vmem>>, vector<1x1x256xf32>
    %35 = vector.shape_cast %34 : vector<1x1x256xf32> to vector<1x256xf32>
    %36 = vector.shape_cast %27 : vector<1x256xf32> to vector<1x1x256xf32>
    tpu.vector_store %arg6[%c0_27, %c0_28, %c0_29], %36 {strides = array<i32>} : memref<1x3x256xf32, #tpu.memory_space<vmem>>, vector<1x1x256xf32>,
    %c0_30 = arith.constant 0 : index
    %c0_31 = arith.constant 0 : index
    %c0_32 = arith.constant 0 : index
    %37 = vector.load %arg7[%c0_30, %c0_31, %c0_32] : memref<1x3x256xf32, #tpu.memory_space<vmem>>, vector<1x1x256xf32>
    %38 = vector.shape_cast %37 : vector<1x1x256xf32> to vector<1x256xf32>
    %39 = vector.shape_cast %33 : vector<1x256xf32> to vector<1x1x256xf32>
    tpu.vector_store %arg7[%c0_30, %c0_31, %c0_32], %39 {strides = array<i32>} : memref<1x3x256xf32, #tpu.memory_space<vmem>>, vector<1x1x256xf32>,
    %c1_33 = arith.constant 1 : index
    %c0_34 = arith.constant 0 : index
    %40 = memref.load %arg2[%c1_33, %c0_34] : memref<3x3xf32, #tpu.memory_space<smem>>
    %c0_35 = arith.constant 0 : index
    %c0_36 = arith.constant 0 : index
    %c0_37 = arith.constant 0 : index
    %41 = vector.load %arg4[%c0_35, %c0_36, %c0_37] : memref<1x3x256xf32, #tpu.memory_space<vmem>>, vector<1x1x256xf32>
    %42 = vector.shape_cast %41 : vector<1x1x256xf32> to vector<1x256xf32>
    %43 = vector.broadcast %40 : f32 to vector<1x256xf32>
    %44 = arith.mulf %43, %42 : vector<1x256xf32>
    %c1_38 = arith.constant 1 : index
    %c0_39 = arith.constant 0 : index
    %45 = memref.load %arg3[%c1_38, %c0_39] : memref<3x3xf32, #tpu.memory_space<smem>>
    %c0_40 = arith.constant 0 : index
    %c0_41 = arith.constant 0 : index
    %c0_42 = arith.constant 0 : index
    %46 = vector.load %arg5[%c0_40, %c0_41, %c0_42] : memref<1x3x256xf32, #tpu.memory_space<vmem>>, vector<1x1x256xf32>
    %47 = vector.shape_cast %46 : vector<1x1x256xf32> to vector<1x256xf32>
    %48 = vector.broadcast %45 : f32 to vector<1x256xf32>
    %49 = arith.mulf %48, %47 : vector<1x256xf32>
    %c1_43 = arith.constant 1 : index
    %c1_44 = arith.constant 1 : index
    %50 = memref.load %arg2[%c1_43, %c1_44] : memref<3x3xf32, #tpu.memory_space<smem>>
    %c0_45 = arith.constant 0 : index
    %c1_46 = arith.constant 1 : index
    %c0_47 = arith.constant 0 : index
    %51 = vector.load %arg4[%c0_45, %c1_46, %c0_47] : memref<1x3x256xf32, #tpu.memory_space<vmem>>, vector<1x1x256xf32>
    %52 = vector.shape_cast %51 : vector<1x1x256xf32> to vector<1x256xf32>
    %53 = vector.broadcast %50 : f32 to vector<1x256xf32>
    %54 = arith.mulf %53, %52 : vector<1x256xf32>
    %55 = arith.addf %44, %54 : vector<1x256xf32>
    %c1_48 = arith.constant 1 : index
    %c1_49 = arith.constant 1 : index
    %56 = memref.load %arg3[%c1_48, %c1_49] : memref<3x3xf32, #tpu.memory_space<smem>>
    %c0_50 = arith.constant 0 : index
    %c1_51 = arith.constant 1 : index
    %c0_52 = arith.constant 0 : index
    %57 = vector.load %arg5[%c0_50, %c1_51, %c0_52] : memref<1x3x256xf32, #tpu.memory_space<vmem>>, vector<1x1x256xf32>
    %58 = vector.shape_cast %57 : vector<1x1x256xf32> to vector<1x256xf32>
    %59 = vector.broadcast %56 : f32 to vector<1x256xf32>
    %60 = arith.mulf %59, %58 : vector<1x256xf32>
    %61 = arith.addf %49, %60 : vector<1x256xf32>
    %c1_53 = arith.constant 1 : index
    %c2_54 = arith.constant 2 : index
    %62 = memref.load %arg2[%c1_53, %c2_54] : memref<3x3xf32, #tpu.memory_space<smem>>
    %c0_55 = arith.constant 0 : index
    %c2_56 = arith.constant 2 : index
    %c0_57 = arith.constant 0 : index
    %63 = vector.load %arg4[%c0_55, %c2_56, %c0_57] : memref<1x3x256xf32, #tpu.memory_space<vmem>>, vector<1x1x256xf32>
    %64 = vector.shape_cast %63 : vector<1x1x256xf32> to vector<1x256xf32>
    %65 = vector.broadcast %62 : f32 to vector<1x256xf32>
    %66 = arith.mulf %65, %64 : vector<1x256xf32>
    %67 = arith.addf %55, %66 : vector<1x256xf32>
    %c1_58 = arith.constant 1 : index
    %c2_59 = arith.constant 2 : index
    %68 = memref.load %arg3[%c1_58, %c2_59] : memref<3x3xf32, #tpu.memory_space<smem>>
    %c0_60 = arith.constant 0 : index
    %c2_61 = arith.constant 2 : index
    %c0_62 = arith.constant 0 : index
    %69 = vector.load %arg5[%c0_60, %c2_61, %c0_62] : memref<1x3x256xf32, #tpu.memory_space<vmem>>, vector<1x1x256xf32>
    %70 = vector.shape_cast %69 : vector<1x1x256xf32> to vector<1x256xf32>
    %71 = vector.broadcast %68 : f32 to vector<1x256xf32>
    %72 = arith.mulf %71, %70 : vector<1x256xf32>
    %73 = arith.addf %61, %72 : vector<1x256xf32>
    %c0_63 = arith.constant 0 : index
    %c1_64 = arith.constant 1 : index
    %c0_65 = arith.constant 0 : index
    %74 = vector.load %arg6[%c0_63, %c1_64, %c0_65] : memref<1x3x256xf32, #tpu.memory_space<vmem>>, vector<1x1x256xf32>
    %75 = vector.shape_cast %74 : vector<1x1x256xf32> to vector<1x256xf32>
    %76 = vector.shape_cast %67 : vector<1x256xf32> to vector<1x1x256xf32>
    tpu.vector_store %arg6[%c0_63, %c1_64, %c0_65], %76 {strides = array<i32>} : memref<1x3x256xf32, #tpu.memory_space<vmem>>, vector<1x1x256xf32>,
    %c0_66 = arith.constant 0 : index
    %c1_67 = arith.constant 1 : index
    %c0_68 = arith.constant 0 : index
    %77 = vector.load %arg7[%c0_66, %c1_67, %c0_68] : memref<1x3x256xf32, #tpu.memory_space<vmem>>, vector<1x1x256xf32>
    %78 = vector.shape_cast %77 : vector<1x1x256xf32> to vector<1x256xf32>
    %79 = vector.shape_cast %73 : vector<1x256xf32> to vector<1x1x256xf32>
    tpu.vector_store %arg7[%c0_66, %c1_67, %c0_68], %79 {strides = array<i32>} : memref<1x3x256xf32, #tpu.memory_space<vmem>>, vector<1x1x256xf32>,
    %c2_69 = arith.constant 2 : index
    %c0_70 = arith.constant 0 : index
    %80 = memref.load %arg2[%c2_69, %c0_70] : memref<3x3xf32, #tpu.memory_space<smem>>
    %c0_71 = arith.constant 0 : index
    %c0_72 = arith.constant 0 : index
    %c0_73 = arith.constant 0 : index
    %81 = vector.load %arg4[%c0_71, %c0_72, %c0_73] : memref<1x3x256xf32, #tpu.memory_space<vmem>>, vector<1x1x256xf32>
    %82 = vector.shape_cast %81 : vector<1x1x256xf32> to vector<1x256xf32>
    %83 = vector.broadcast %80 : f32 to vector<1x256xf32>
    %84 = arith.mulf %83, %82 : vector<1x256xf32>
    %c2_74 = arith.constant 2 : index
    %c0_75 = arith.constant 0 : index
    %85 = memref.load %arg3[%c2_74, %c0_75] : memref<3x3xf32, #tpu.memory_space<smem>>
    %c0_76 = arith.constant 0 : index
    %c0_77 = arith.constant 0 : index
    %c0_78 = arith.constant 0 : index
    %86 = vector.load %arg5[%c0_76, %c0_77, %c0_78] : memref<1x3x256xf32, #tpu.memory_space<vmem>>, vector<1x1x256xf32>
    %87 = vector.shape_cast %86 : vector<1x1x256xf32> to vector<1x256xf32>
    %88 = vector.broadcast %85 : f32 to vector<1x256xf32>
    %89 = arith.mulf %88, %87 : vector<1x256xf32>
    %c2_79 = arith.constant 2 : index
    %c1_80 = arith.constant 1 : index
    %90 = memref.load %arg2[%c2_79, %c1_80] : memref<3x3xf32, #tpu.memory_space<smem>>
    %c0_81 = arith.constant 0 : index
    %c1_82 = arith.constant 1 : index
    %c0_83 = arith.constant 0 : index
    %91 = vector.load %arg4[%c0_81, %c1_82, %c0_83] : memref<1x3x256xf32, #tpu.memory_space<vmem>>, vector<1x1x256xf32>
    %92 = vector.shape_cast %91 : vector<1x1x256xf32> to vector<1x256xf32>
    %93 = vector.broadcast %90 : f32 to vector<1x256xf32>
    %94 = arith.mulf %93, %92 : vector<1x256xf32>
    %95 = arith.addf %84, %94 : vector<1x256xf32>
    %c2_84 = arith.constant 2 : index
    %c1_85 = arith.constant 1 : index
    %96 = memref.load %arg3[%c2_84, %c1_85] : memref<3x3xf32, #tpu.memory_space<smem>>
    %c0_86 = arith.constant 0 : index
    %c1_87 = arith.constant 1 : index
    %c0_88 = arith.constant 0 : index
    %97 = vector.load %arg5[%c0_86, %c1_87, %c0_88] : memref<1x3x256xf32, #tpu.memory_space<vmem>>, vector<1x1x256xf32>
    %98 = vector.shape_cast %97 : vector<1x1x256xf32> to vector<1x256xf32>
    %99 = vector.broadcast %96 : f32 to vector<1x256xf32>
    %100 = arith.mulf %99, %98 : vector<1x256xf32>
    %101 = arith.addf %89, %100 : vector<1x256xf32>
    %c2_89 = arith.constant 2 : index
    %c2_90 = arith.constant 2 : index
    %102 = memref.load %arg2[%c2_89, %c2_90] : memref<3x3xf32, #tpu.memory_space<smem>>
    %c0_91 = arith.constant 0 : index
    %c2_92 = arith.constant 2 : index
    %c0_93 = arith.constant 0 : index
    %103 = vector.load %arg4[%c0_91, %c2_92, %c0_93] : memref<1x3x256xf32, #tpu.memory_space<vmem>>, vector<1x1x256xf32>
    %104 = vector.shape_cast %103 : vector<1x1x256xf32> to vector<1x256xf32>
    %105 = vector.broadcast %102 : f32 to vector<1x256xf32>
    %106 = arith.mulf %105, %104 : vector<1x256xf32>
    %107 = arith.addf %95, %106 : vector<1x256xf32>
    %c2_94 = arith.constant 2 : index
    %c2_95 = arith.constant 2 : index
    %108 = memref.load %arg3[%c2_94, %c2_95] : memref<3x3xf32, #tpu.memory_space<smem>>
    %c0_96 = arith.constant 0 : index
    %c2_97 = arith.constant 2 : index
    %c0_98 = arith.constant 0 : index
    %109 = vector.load %arg5[%c0_96, %c2_97, %c0_98] : memref<1x3x256xf32, #tpu.memory_space<vmem>>, vector<1x1x256xf32>
    %110 = vector.shape_cast %109 : vector<1x1x256xf32> to vector<1x256xf32>
    %111 = vector.broadcast %108 : f32 to vector<1x256xf32>
    %112 = arith.mulf %111, %110 : vector<1x256xf32>
    %113 = arith.addf %101, %112 : vector<1x256xf32>
    %c0_99 = arith.constant 0 : index
    %c2_100 = arith.constant 2 : index
    %c0_101 = arith.constant 0 : index
    %114 = vector.load %arg6[%c0_99, %c2_100, %c0_101] : memref<1x3x256xf32, #tpu.memory_space<vmem>>, vector<1x1x256xf32>
    %115 = vector.shape_cast %114 : vector<1x1x256xf32> to vector<1x256xf32>
    %116 = vector.shape_cast %107 : vector<1x256xf32> to vector<1x1x256xf32>
    tpu.vector_store %arg6[%c0_99, %c2_100, %c0_101], %116 {strides = array<i32>} : memref<1x3x256xf32, #tpu.memory_space<vmem>>, vector<1x1x256xf32>,
    %c0_102 = arith.constant 0 : index
    %c2_103 = arith.constant 2 : index
    %c0_104 = arith.constant 0 : index
    %117 = vector.load %arg7[%c0_102, %c2_103, %c0_104] : memref<1x3x256xf32, #tpu.memory_space<vmem>>, vector<1x1x256xf32>
    %118 = vector.shape_cast %117 : vector<1x1x256xf32> to vector<1x256xf32>
    %119 = vector.shape_cast %113 : vector<1x256xf32> to vector<1x1x256xf32>
    tpu.vector_store %arg7[%c0_102, %c2_103, %c0_104], %119 {strides = array<i32>} : memref<1x3x256xf32, #tpu.memory_space<vmem>>, vector<1x1x256xf32>,
    return
  }
  func.func @transform_0(%arg0: i32, %arg1: i32) -> (i32, i32) {
    %c0_i32 = arith.constant 0 : i32
    %c0_i32_0 = arith.constant 0 : i32
    %c0_i32_1 = arith.constant 0 : i32
    return %c0_i32, %c0_i32_0 : i32, i32
  }
  func.func @transform_1(%arg0: i32, %arg1: i32) -> (i32, i32) {
    %c0_i32 = arith.constant 0 : i32
    %c0_i32_0 = arith.constant 0 : i32
    %c0_i32_1 = arith.constant 0 : i32
    return %c0_i32, %c0_i32_0 : i32, i32
  }
  func.func @transform_2(%arg0: i32, %arg1: i32) -> (i32, i32, i32) {
    %c0_i32 = arith.constant 0 : i32
    %c0_i32_0 = arith.constant 0 : i32
    return %arg0, %c0_i32, %arg1 : i32, i32, i32
  }
  func.func @transform_3(%arg0: i32, %arg1: i32) -> (i32, i32, i32) {
    %c0_i32 = arith.constant 0 : i32
    %c0_i32_0 = arith.constant 0 : i32
    return %arg0, %c0_i32, %arg1 : i32, i32, i32
  }
  func.func @transform_4(%arg0: i32, %arg1: i32) -> (i32, i32, i32) {
    %c0_i32 = arith.constant 0 : i32
    %c0_i32_0 = arith.constant 0 : i32
    return %arg0, %c0_i32, %arg1 : i32, i32, i32
  }
  func.func @transform_5(%arg0: i32, %arg1: i32) -> (i32, i32, i32) {
    %c0_i32 = arith.constant 0 : i32
    %c0_i32_0 = arith.constant 0 : i32
    return %arg0, %c0_i32, %arg1 : i32, i32, i32
  }
}

</mosaic_0001>

<llo_original>
// kernel: tpu_custom_call.1
$region0: #{tpu_custom_call.1}
  #allocation0 [shape = 'u32[]', space=smem, size = 0x4, offset = 0x4, fixed_abs, tag = 'smem constant byte address 0x4 - core index']
  #allocation1 [shape = 'u32[144,128]{1,0:T(1,128)}', space=vmem, size = 0x12000, scoped, tag = 'internal scratch']
  %s0 = inlined_call_operand.vmem [shape: f32[3,3], index: 0, kind: input, shape index: {}]
  %s1 = inlined_call_operand.vmem [shape: f32[3,3], index: 1, kind: input, shape index: {}]
  %s2 = inlined_call_operand.vmem [shape: f32[2,3,256], index: 2, kind: input, shape index: {}]
  %s3 = inlined_call_operand.vmem [shape: f32[2,3,256], index: 3, kind: input, shape index: {}]
  %s4 = inlined_call_operand.vmem [shape: f32[2,3,256], index: 4, kind: output, shape index: {0}]
  %s5 = inlined_call_operand.vmem [shape: f32[2,3,256], index: 5, kind: output, shape index: {1}]
  %6 = xla_tuple %s4, %s5
  %s7 = sld [smem:[#allocation0]]
  $region65: #{tpu_custom_call.1} parent=0
    _
  %s9 = ssub.s32 1, %s7
  %s10 = scalar_select 0, %s9, %s7
  $region1: #{tpu_custom_call.1} parent=0
    #allocation2 [shape = 'u8[2048]{0}', space=smem, size = 0x800, scoped, tag = 'input window, operand 0, single buffered']
    #allocation3 [shape = 's32[2]{0}', space=sflag, size = 0x8, scoped, tag = 'scoped memory for tpu_custom_call.1']
    #allocation4 [shape = 'u8[2048]{0}', space=smem, size = 0x800, scoped, tag = 'input window, operand 1, single buffered']
    #allocation5 [shape = 's32[1]{0}', space=sflag, size = 0x4, scoped, tag = 'scoped memory for tpu_custom_call.1']
    %11 = vsyncpa [#allocation3], 0
    %12 = vsyncpa [#allocation5], 0
    loop: start=0, step=1, limit=4
    $region2: #{tpu_custom_call.1} parent=1 // loop_pre_header
      _
    $region3: #{tpu_custom_call.1} parent=1 // loop_header
      %s14 = sphi 0, %s18
      %p15 = scmp.ge.s32.totalorder %s14, 4
      %s21 = sphi 0, %s33
      %s22 = sphi 0, %s29
      %s23 = sphi 0, %s21
      %s24 = sphi 0, %s22
      %s25 = sphi 0, %s23
      %s26 = sphi 0, %s24
      %s34 = sphi 0, %s34
      %s36 = sphi 0, %s34
      %s37 = sphi 0, %s36
      %s51 = sphi 0, %s37
      %s55 = sphi 0, %s55
      %s57 = sphi 0, %s55
      %s58 = sphi 0, %s57
      %s72 = sphi 0, %s58
      %s80 = sphi 0, %s82
      %s83 = sphi 0, %s80
      %s84 = sphi 0, %s83
      %s100 = sphi 0, %s84
      %s108 = sphi 0, %s110
      %s111 = sphi 0, %s108
      %s112 = sphi 0, %s111
      %s128 = sphi 0, %s112
      %s136 = sphi 0, %s138
      %s139 = sphi 0, %s136
      %s140 = sphi 0, %s139
      %s156 = sphi 0, %s140
      %s164 = sphi 0, %s166
      %s167 = sphi 0, %s164
      %s168 = sphi 0, %s167
      %s184 = sphi 0, %s168
    $region4: #{tpu_custom_call.1} parent=1 // loop_header_branch
      %17 = sbr.rel (%p15) target = $region8
    $region5: #{tpu_custom_call.1} parent=1 // loop_body
      %s19 = ssub.s32 %s14, 1
      %s20 = ssub.s32 %s14, 2
      %s27 = sadd.s32 1, %s22
      %p28 = scmp.ge.s32.totalorder %s27, 1
      %s29 = scalar_select %p28, 0, %s27
      %s30 = sadd.s32 1, %s21
      %s31 = scalar_select %p28, %s30, %s21
      %p32 = scmp.ge.s32.totalorder %s31, 2
      %s33 = scalar_select %p32, 0, %s31
      %s35 = sadd.s32 %s34, 1
      %p38 = scmp.eq.s32.totalorder %s14, 1
      %p39 = scmp.ne.s32.totalorder %s34, %s36
      %p40 = scmp.eq.s32.totalorder %s14, 0
      %p41 = por %p39, %p40
      %p42 = scmp.ne.s32.totalorder %s34, %s36
      %p43 = scmp.eq.s32.totalorder %s19, 1
      %p44 = por %p42, %p43
      %p45 = scmp.ne.s32.totalorder %s36, %s37
      %p46 = scmp.eq.s32.totalorder %s19, 0
      %p47 = por %p45, %p46
      %p48 = scmp.ne.s32.totalorder %s36, %s37
      %p49 = scmp.eq.s32.totalorder %s20, 1
      %p50 = por %p48, %p49
      %p52 = scmp.ne.s32.totalorder %s37, %s51
      %p53 = scmp.eq.s32.totalorder %s20, 0
      %p54 = por %p52, %p53
      %s56 = sadd.s32 %s55, 1
      %p59 = scmp.eq.s32.totalorder %s14, 1
      %p60 = scmp.ne.s32.totalorder %s55, %s57
      %p61 = scmp.eq.s32.totalorder %s14, 0
      %p62 = por %p60, %p61
      %p63 = scmp.ne.s32.totalorder %s55, %s57
      %p64 = scmp.eq.s32.totalorder %s19, 1
      %p65 = por %p63, %p64
      %p66 = scmp.ne.s32.totalorder %s57, %s58
      %p67 = scmp.eq.s32.totalorder %s19, 0
      %p68 = por %p66, %p67
      %p69 = scmp.ne.s32.totalorder %s57, %s58
      %p70 = scmp.eq.s32.totalorder %s20, 1
      %p71 = por %p69, %p70
      %p73 = scmp.ne.s32.totalorder %s58, %s72
      %p74 = scmp.eq.s32.totalorder %s20, 0
      %p75 = por %p73, %p74
      %s76 = ssub.s32 %s21, %s33
      %s77 = ssub.s32 %s22, %s29
      %s78 = sor.u32 %s76, %s77
      %p79 = scmp.eq.s32.totalorder %s78, 0
      %s81 = sadd.s32 %s80, 1
      %s82 = scalar_select %p79, %s80, %s81
      %p85 = pneg %p79
      %p86 = scmp.eq.s32.totalorder %s14, 1
      %p87 = por %p85, %p86
      %p88 = scmp.ne.s32.totalorder %s80, %s83
      %p89 = scmp.eq.s32.totalorder %s14, 0
      %p90 = por %p88, %p89
      %p91 = scmp.ne.s32.totalorder %s80, %s83
      %p92 = scmp.eq.s32.totalorder %s19, 1
      %p93 = por %p91, %p92
      %p94 = scmp.ne.s32.totalorder %s83, %s84
      %p95 = scmp.eq.s32.totalorder %s19, 0
      %p96 = por %p94, %p95
      %p97 = scmp.ne.s32.totalorder %s83, %s84
      %p98 = scmp.eq.s32.totalorder %s20, 1
      %p99 = por %p97, %p98
      %p101 = scmp.ne.s32.totalorder %s84, %s100
      %p102 = scmp.eq.s32.totalorder %s20, 0
      %p103 = por %p101, %p102
      %s104 = ssub.s32 %s21, %s33
      %s105 = ssub.s32 %s22, %s29
      %s106 = sor.u32 %s104, %s105
      %p107 = scmp.eq.s32.totalorder %s106, 0
      %s109 = sadd.s32 %s108, 1
      %s110 = scalar_select %p107, %s108, %s109
      %p113 = pneg %p107
      %p114 = scmp.eq.s32.totalorder %s14, 1
      %p115 = por %p113, %p114
      %p116 = scmp.ne.s32.totalorder %s108, %s111
      %p117 = scmp.eq.s32.totalorder %s14, 0
      %p118 = por %p116, %p117
      %p119 = scmp.ne.s32.totalorder %s108, %s111
      %p120 = scmp.eq.s32.totalorder %s19, 1
      %p121 = por %p119, %p120
      %p122 = scmp.ne.s32.totalorder %s111, %s112
      %p123 = scmp.eq.s32.totalorder %s19, 0
      %p124 = por %p122, %p123
      %p125 = scmp.ne.s32.totalorder %s111, %s112
      %p126 = scmp.eq.s32.totalorder %s20, 1
      %p127 = por %p125, %p126
      %p129 = scmp.ne.s32.totalorder %s112, %s128
      %p130 = scmp.eq.s32.totalorder %s20, 0
      %p131 = por %p129, %p130
      %s132 = ssub.s32 %s21, %s33
      %s133 = ssub.s32 %s22, %s29
      %s134 = sor.u32 %s132, %s133
      %p135 = scmp.eq.s32.totalorder %s134, 0
      %s137 = sadd.s32 %s136, 1
      %s138 = scalar_select %p135, %s136, %s137
      %p141 = pneg %p135
      %p142 = scmp.eq.s32.totalorder %s14, 1
      %p143 = por %p141, %p142
      %p144 = scmp.ne.s32.totalorder %s136, %s139
      %p145 = scmp.eq.s32.totalorder %s14, 0
      %p146 = por %p144, %p145
      %p147 = scmp.ne.s32.totalorder %s136, %s139
      %p148 = scmp.eq.s32.totalorder %s19, 1
      %p149 = por %p147, %p148
      %p150 = scmp.ne.s32.totalorder %s139, %s140
      %p151 = scmp.eq.s32.totalorder %s19, 0
      %p152 = por %p150, %p151
      %p153 = scmp.ne.s32.totalorder %s139, %s140
      %p154 = scmp.eq.s32.totalorder %s20, 1
      %p155 = por %p153, %p154
      %p157 = scmp.ne.s32.totalorder %s140, %s156
      %p158 = scmp.eq.s32.totalorder %s20, 0
      %p159 = por %p157, %p158
      %s160 = ssub.s32 %s21, %s33
      %s161 = ssub.s32 %s22, %s29
      %s162 = sor.u32 %s160, %s161
      %p163 = scmp.eq.s32.totalorder %s162, 0
      %s165 = sadd.s32 %s164, 1
      %s166 = scalar_select %p163, %s164, %s165
      %p169 = pneg %p163
      %p170 = scmp.eq.s32.totalorder %s14, 1
      %p171 = por %p169, %p170
      %p172 = scmp.ne.s32.totalorder %s164, %s167
      %p173 = scmp.eq.s32.totalorder %s14, 0
      %p174 = por %p172, %p173
      %p175 = scmp.ne.s32.totalorder %s164, %s167
      %p176 = scmp.eq.s32.totalorder %s19, 1
      %p177 = por %p175, %p176
      %p178 = scmp.ne.s32.totalorder %s167, %s168
      %p179 = scmp.eq.s32.totalorder %s19, 0
      %p180 = por %p178, %p179
      %p181 = scmp.ne.s32.totalorder %s167, %s168
      %p182 = scmp.eq.s32.totalorder %s20, 1
      %p183 = por %p181, %p182
      %p185 = scmp.ne.s32.totalorder %s168, %s184
      %p186 = scmp.eq.s32.totalorder %s20, 0
      %p187 = por %p185, %p186
      %p188 = scmp.le.s32.totalorder 1, %s14
      %p189 = scmp.lt.s32.totalorder %s14, 3
      %p190 = pnand %p188, %p189
      %p191 = pneg %p190
      // Predicated region
      $region9: #{tpu_custom_call.1} parent=5 // pred_check
        _
      $region10: #{tpu_custom_call.1} parent=5 // pred_check_branch
        %193 = sbr.rel (%p190) target = $region12
      $region11: #{tpu_custom_call.1} parent=5 // pred_region
        %s194 = ssub.s32 %s14, 1
        // Predicated region
        $region13: #{tpu_custom_call.1} parent=11 // pred_check
          %p195 = pneg %p47
        $region14: #{tpu_custom_call.1} parent=11 // pred_check_branch
          %197 = sbr.rel (%p195) target = $region16
        $region15: #{tpu_custom_call.1} parent=11 // pred_region
          %s199 = ssub.s32 64, 64
          %200 = vsyncadd [#allocation3], %s199
          %s202 = sshll.u32 %s0, 4
          %s203 = int_to_ptr.vmem [resolvable:$true] %s202
          %205 = dma.vmem_to_smem %s203, 64, [#allocation2], [#allocation3]
        $region16: #{tpu_custom_call.1} parent=11 // pred_fallthru
          _
        // Predicated region
        $region17: #{tpu_custom_call.1} parent=11 // pred_check
          %p206 = pneg %p68
        $region18: #{tpu_custom_call.1} parent=11 // pred_check_branch
          %208 = sbr.rel (%p206) target = $region20
        $region19: #{tpu_custom_call.1} parent=11 // pred_region
          %s210 = ssub.s32 64, 64
          %211 = vsyncadd [#allocation5], %s210
          %s213 = sshll.u32 %s1, 4
          %s214 = int_to_ptr.vmem [resolvable:$true] %s213
          %216 = dma.vmem_to_smem %s214, 64, [#allocation4], [#allocation5]
        $region20: #{tpu_custom_call.1} parent=11 // pred_fallthru
          _
      $region12: #{tpu_custom_call.1} parent=5 // pred_fallthru
        _
      %p217 = scmp.lt.s32.totalorder %s14, 2
      // Predicated region
      $region21: #{tpu_custom_call.1} parent=5 // pred_check
        %p218 = pneg %p217
      $region22: #{tpu_custom_call.1} parent=5 // pred_check_branch
        %220 = sbr.rel (%p218) target = $region24
      $region23: #{tpu_custom_call.1} parent=5 // pred_region
        // Predicated region
        $region25: #{tpu_custom_call.1} parent=23 // pred_check
          %p221 = pneg %p90
        $region26: #{tpu_custom_call.1} parent=23 // pred_check_branch
          %223 = sbr.rel (%p221) target = $region28
        $region27: #{tpu_custom_call.1} parent=23 // pred_region
          %s224 = smul.u32 2, %s22
          %p225 = scmp.lt.s32.totalorder %s21, 1
          %s226 = scalar_select %p225, %s21, 1
          %p227 = scmp.lt.s32.totalorder %s224, 1
          %s228 = scalar_select %p227, %s224, 1
          %s229 = smul.addr %s226, 2
          %s230 = sadd.s32 %s228, %s229
          %s231 = smul.addr %s230, 4
          %s232 = scalar_lea.vmem %s2, %s231
          %s233 = smul.u32 2, %s22
        $region28: #{tpu_custom_call.1} parent=23 // pred_fallthru
          _
        // Predicated region
        $region29: #{tpu_custom_call.1} parent=23 // pred_check
          %p234 = pneg %p118
        $region30: #{tpu_custom_call.1} parent=23 // pred_check_branch
          %236 = sbr.rel (%p234) target = $region32
        $region31: #{tpu_custom_call.1} parent=23 // pred_region
          %s237 = smul.u32 2, %s22
          %p238 = scmp.lt.s32.totalorder %s21, 1
          %s239 = scalar_select %p238, %s21, 1
          %p240 = scmp.lt.s32.totalorder %s237, 1
          %s241 = scalar_select %p240, %s237, 1
          %s242 = smul.addr %s239, 2
          %s243 = sadd.s32 %s241, %s242
          %s244 = smul.addr %s243, 4
          %s245 = scalar_lea.vmem %s3, %s244
          %s246 = smul.u32 2, %s22
        $region32: #{tpu_custom_call.1} parent=23 // pred_fallthru
          _
      $region24: #{tpu_custom_call.1} parent=5 // pred_fallthru
        _
      %p247 = scmp.le.s32.totalorder 1, %s14
      %p248 = scmp.lt.s32.totalorder %s14, 3
      %p249 = pnand %p247, %p248
      %p250 = pneg %p249
      // Predicated region
      $region33: #{tpu_custom_call.1} parent=5 // pred_check
        _
      $region34: #{tpu_custom_call.1} parent=5 // pred_check_branch
        %252 = sbr.rel (%p249) target = $region36
      $region35: #{tpu_custom_call.1} parent=5 // pred_region
        %s253 = ssub.s32 %s14, 1
        // Predicated region
        $region37: #{tpu_custom_call.1} parent=35 // pred_check
          %p254 = pneg %p47
        $region38: #{tpu_custom_call.1} parent=35 // pred_check_branch
          %256 = sbr.rel (%p254) target = $region40
        $region39: #{tpu_custom_call.1} parent=35 // pred_region
          %257 = dma.done [#allocation3], 64
        $region40: #{tpu_custom_call.1} parent=35 // pred_fallthru
          _
        // Predicated region
        $region41: #{tpu_custom_call.1} parent=35 // pred_check
          %p258 = pneg %p68
        $region42: #{tpu_custom_call.1} parent=35 // pred_check_branch
          %260 = sbr.rel (%p258) target = $region44
        $region43: #{tpu_custom_call.1} parent=35 // pred_region
          %261 = dma.done [#allocation5], 64
        $region44: #{tpu_custom_call.1} parent=35 // pred_fallthru
          _
        %262 = sfence
        %p263 = pneg %p47
        %p264 = pneg %p44
        %p265 = pneg %p68
        %p266 = pneg %p65
        %s267 = smul.u32 2, %s24
        %p268 = scmp.lt.s32.totalorder %s23, 1
        %s269 = scalar_select %p268, %s23, 1
        %p270 = scmp.lt.s32.totalorder %s267, 1
        %s271 = scalar_select %p270, %s267, 1
        %s272 = smul.addr %s269, 2
        %s273 = sadd.s32 %s271, %s272
        %s274 = smul.addr %s273, 4
        %s275 = scalar_lea.vmem %s2, %s274
        %p276 = pneg %p96
        %p277 = pneg %p93
        %s278 = smul.u32 2, %s24
        %p279 = scmp.lt.s32.totalorder %s23, 1
        %s280 = scalar_select %p279, %s23, 1
        %p281 = scmp.lt.s32.totalorder %s278, 1
        %s282 = scalar_select %p281, %s278, 1
        %s283 = smul.addr %s280, 2
        %s284 = sadd.s32 %s282, %s283
        %s285 = smul.addr %s284, 4
        %s286 = scalar_lea.vmem %s3, %s285
        %p287 = pneg %p124
        %p288 = pneg %p121
        %p289 = pneg %p152
        %p290 = pneg %p149
        %s291 = smul.u32 2, %s24
        %p292 = scmp.lt.s32.totalorder %s23, 1
        %s293 = scalar_select %p292, %s23, 1
        %p294 = scmp.lt.s32.totalorder %s291, 1
        %s295 = scalar_select %p294, %s291, 1
        %s296 = smul.addr %s293, 2
        %s297 = sadd.s32 %s295, %s296
        %s298 = smul.addr %s297, 4
        %s299 = scalar_lea.vmem %s4, %s298
        %p300 = pneg %p180
        %p301 = pneg %p177
        %s302 = smul.u32 2, %s24
        %p303 = scmp.lt.s32.totalorder %s23, 1
        %s304 = scalar_select %p303, %s23, 1
        %p305 = scmp.lt.s32.totalorder %s302, 1
        %s306 = scalar_select %p305, %s302, 1
        %s307 = smul.addr %s304, 2
        %s308 = sadd.s32 %s306, %s307
        %s309 = smul.addr %s308, 4
        %s310 = scalar_lea.vmem %s5, %s309
        %s311 = smul.u32 2, %s24
        %p312 = scmp.lt.s32.totalorder %s23, 1
        %s313 = scalar_select %p312, %s23, 1
        %p314 = scmp.lt.s32.totalorder %s311, 1
        %s315 = scalar_select %p314, %s311, 1
        %s316 = smul.addr %s313, 2
        %s317 = sadd.s32 %s315, %s316
        %s318 = smul.addr %s317, 4
        %s319 = scalar_lea.vmem %s2, %s318
        %s320 = smul.u32 2, %s24
        %s321 = smul.u32 2, %s24
        %p322 = scmp.lt.s32.totalorder %s23, 1
        %s323 = scalar_select %p322, %s23, 1
        %p324 = scmp.lt.s32.totalorder %s321, 1
        %s325 = scalar_select %p324, %s321, 1
        %s326 = smul.addr %s323, 2
        %s327 = sadd.s32 %s325, %s326
        %s328 = smul.addr %s327, 4
        %s329 = scalar_lea.vmem %s3, %s328
        %s330 = smul.u32 2, %s24
        %s331 = smul.u32 2, %s24
        %p332 = scmp.lt.s32.totalorder %s23, 1
        %s333 = scalar_select %p332, %s23, 1
        %p334 = scmp.lt.s32.totalorder %s331, 1
        %s335 = scalar_select %p334, %s331, 1
        %s336 = smul.addr %s333, 2
        %s337 = sadd.s32 %s335, %s336
        %s338 = smul.addr %s337, 4
        %s339 = scalar_lea.vmem %s4, %s338
        %s340 = smul.u32 2, %s24
        %s341 = smul.u32 2, %s24
        %p342 = scmp.lt.s32.totalorder %s23, 1
        %s343 = scalar_select %p342, %s23, 1
        %p344 = scmp.lt.s32.totalorder %s341, 1
        %s345 = scalar_select %p344, %s341, 1
        %s346 = smul.addr %s343, 2
        %s347 = sadd.s32 %s345, %s346
        %s348 = smul.addr %s347, 4
        %s349 = scalar_lea.vmem %s5, %s348
        %s350 = smul.u32 2, %s24
        %s351 = sld [smem:[#allocation2]]
        %v352 = vld [vmem:[%s319] ss:$4 sm:$0x3]
        %v353 = vstv %s351
        %v354 = vmul.f32 %v353, %v352
        %s355 = sld [smem:[#allocation4]]
        %v356 = vld [vmem:[%s329] ss:$4 sm:$0x3]
        %v357 = vstv %s355
        %v358 = vmul.f32 %v357, %v356
        %s359 = sld [smem:[#allocation2 + $0x1]]
        %s360 = scalar_lea.vmem %s319, 1
        %v361 = vld [vmem:[%s360] ss:$4 sm:$0x3]
        %v362 = vstv %s359
        %v363 = vmul.f32 %v362, %v361
        %v364 = vadd.f32 %v354, %v363
        %s365 = sld [smem:[#allocation4 + $0x1]]
        %s366 = scalar_lea.vmem %s329, 1
        %v367 = vld [vmem:[%s366] ss:$4 sm:$0x3]
        %v368 = vstv %s365
        %v369 = vmul.f32 %v368, %v367
        %v370 = vadd.f32 %v358, %v369
        %s371 = sld [smem:[#allocation2 + $0x2]]
        %s372 = scalar_lea.vmem %s319, 2
        %v373 = vld [vmem:[%s372] ss:$4 sm:$0x3]
        %v374 = vstv %s371
        %v375 = vmul.f32 %v374, %v373
        %v376 = vadd.f32 %v364, %v375
        %s377 = sld [smem:[#allocation4 + $0x2]]
        %s378 = scalar_lea.vmem %s329, 2
        %v379 = vld [vmem:[%s378] ss:$4 sm:$0x3]
        %v380 = vstv %s377
        %v381 = vmul.f32 %v380, %v379
        %v382 = vadd.f32 %v370, %v381
        %v383 = vlaneseq
        %vm384 = vcmp.ge.s32.totalorder %v383, 0
        %vm385 = vcmp.lt.s32.totalorder %v383, 256
        %vm386 = vmand %vm384, %vm385
        %387 = vst.msk [vmem:[%s339] ss:$4 sm:$0x3] %vm386, %v376
        %388 = vst.msk [vmem:[%s349] ss:$4 sm:$0x3] %vm386, %v382
        %s389 = sld [smem:[#allocation2 + $0x80]]
        %v390 = vld [vmem:[%s319] ss:$4 sm:$0x3]
        %v391 = vstv %s389
        %v392 = vmul.f32 %v391, %v390
        %s393 = sld [smem:[#allocation4 + $0x80]]
        %v394 = vld [vmem:[%s329] ss:$4 sm:$0x3]
        %v395 = vstv %s393
        %v396 = vmul.f32 %v395, %v394
        %s397 = sld [smem:[#allocation2 + $0x81]]
        %v398 = vld [vmem:[%s360] ss:$4 sm:$0x3]
        %v399 = vstv %s397
        %v400 = vmul.f32 %v399, %v398
        %v401 = vadd.f32 %v392, %v400
        %s402 = sld [smem:[#allocation4 + $0x81]]
        %v403 = vld [vmem:[%s366] ss:$4 sm:$0x3]
        %v404 = vstv %s402
        %v405 = vmul.f32 %v404, %v403
        %v406 = vadd.f32 %v396, %v405
        %s407 = sld [smem:[#allocation2 + $0x82]]
        %v408 = vld [vmem:[%s372] ss:$4 sm:$0x3]
        %v409 = vstv %s407
        %v410 = vmul.f32 %v409, %v408
        %v411 = vadd.f32 %v401, %v410
        %s412 = sld [smem:[#allocation4 + $0x82]]
        %v413 = vld [vmem:[%s378] ss:$4 sm:$0x3]
        %v414 = vstv %s412
        %v415 = vmul.f32 %v414, %v413
        %v416 = vadd.f32 %v406, %v415
        %s417 = scalar_lea.vmem %s339, 1
        %418 = vst.msk [vmem:[%s417] ss:$4 sm:$0x3] %vm386, %v411
        %s419 = scalar_lea.vmem %s349, 1
        %420 = vst.msk [vmem:[%s419] ss:$4 sm:$0x3] %vm386, %v416
        %s421 = sld [smem:[#allocation2 + $0x100]]
        %v422 = vld [vmem:[%s319] ss:$4 sm:$0x3]
        %v423 = vstv %s421
        %v424 = vmul.f32 %v423, %v422
        %s425 = sld [smem:[#allocation4 + $0x100]]
        %v426 = vld [vmem:[%s329] ss:$4 sm:$0x3]
        %v427 = vstv %s425
        %v428 = vmul.f32 %v427, %v426
        %s429 = sld [smem:[#allocation2 + $0x101]]
        %v430 = vld [vmem:[%s360] ss:$4 sm:$0x3]
        %v431 = vstv %s429
        %v432 = vmul.f32 %v431, %v430
        %v433 = vadd.f32 %v424, %v432
        %s434 = sld [smem:[#allocation4 + $0x101]]
        %v435 = vld [vmem:[%s366] ss:$4 sm:$0x3]
        %v436 = vstv %s434
        %v437 = vmul.f32 %v436, %v435
        %v438 = vadd.f32 %v428, %v437
        %s439 = sld [smem:[#allocation2 + $0x102]]
        %v440 = vld [vmem:[%s372] ss:$4 sm:$0x3]
        %v441 = vstv %s439
        %v442 = vmul.f32 %v441, %v440
        %v443 = vadd.f32 %v433, %v442
        %s444 = sld [smem:[#allocation4 + $0x102]]
        %v445 = vld [vmem:[%s378] ss:$4 sm:$0x3]
        %v446 = vstv %s444
        %v447 = vmul.f32 %v446, %v445
        %v448 = vadd.f32 %v438, %v447
        %s449 = scalar_lea.vmem %s339, 2
        %450 = vst.msk [vmem:[%s449] ss:$4 sm:$0x3] %vm386, %v443
        %s451 = scalar_lea.vmem %s349, 2
        %452 = vst.msk [vmem:[%s451] ss:$4 sm:$0x3] %vm386, %v448
        %s453 = smul.u32 2, %s24
        %p454 = scmp.lt.s32.totalorder %s23, 1
        %s455 = scalar_select %p454, %s23, 1
        %p456 = scmp.lt.s32.totalorder %s453, 1
        %s457 = scalar_select %p456, %s453, 1
        %s458 = smul.addr %s455, 2
        %s459 = sadd.s32 %s457, %s458
        %s460 = smul.addr %s459, 4
        %s461 = scalar_lea.vmem %s4, %s460
        %s462 = smul.u32 2, %s24
        %p463 = scmp.lt.s32.totalorder %s23, 1
        %s464 = scalar_select %p463, %s23, 1
        %p465 = scmp.lt.s32.totalorder %s462, 1
        %s466 = scalar_select %p465, %s462, 1
        %s467 = smul.addr %s464, 2
        %s468 = sadd.s32 %s466, %s467
        %s469 = smul.addr %s468, 4
        %s470 = scalar_lea.vmem %s5, %s469
        // Predicated region
        $region45: #{tpu_custom_call.1} parent=35 // pred_check
          %p471 = pneg %p149
        $region46: #{tpu_custom_call.1} parent=35 // pred_check_branch
          %473 = sbr.rel (%p471) target = $region48
        $region47: #{tpu_custom_call.1} parent=35 // pred_region
          %s474 = smul.u32 2, %s24
        $region48: #{tpu_custom_call.1} parent=35 // pred_fallthru
          _
        // Predicated region
        $region49: #{tpu_custom_call.1} parent=35 // pred_check
          %p475 = pneg %p177
        $region50: #{tpu_custom_call.1} parent=35 // pred_check_branch
          %477 = sbr.rel (%p475) target = $region52
        $region51: #{tpu_custom_call.1} parent=35 // pred_region
          %s478 = smul.u32 2, %s24
        $region52: #{tpu_custom_call.1} parent=35 // pred_fallthru
          _
      $region36: #{tpu_custom_call.1} parent=5 // pred_fallthru
        _
      %p479 = scmp.le.s32.totalorder 2, %s14
      // Predicated region
      $region53: #{tpu_custom_call.1} parent=5 // pred_check
        %p480 = pneg %p479
      $region54: #{tpu_custom_call.1} parent=5 // pred_check_branch
        %482 = sbr.rel (%p480) target = $region56
      $region55: #{tpu_custom_call.1} parent=5 // pred_region
        %s483 = ssub.s32 %s14, 2
        // Predicated region
        $region57: #{tpu_custom_call.1} parent=55 // pred_check
          %p484 = pneg %p155
        $region58: #{tpu_custom_call.1} parent=55 // pred_check_branch
          %486 = sbr.rel (%p484) target = $region60
        $region59: #{tpu_custom_call.1} parent=55 // pred_region
          %s487 = smul.u32 2, %s26
          %p488 = scmp.lt.s32.totalorder %s25, 1
          %s489 = scalar_select %p488, %s25, 1
          %p490 = scmp.lt.s32.totalorder %s487, 1
          %s491 = scalar_select %p490, %s487, 1
          %s492 = smul.addr %s489, 2
          %s493 = sadd.s32 %s491, %s492
          %s494 = smul.addr %s493, 4
          %s495 = scalar_lea.vmem %s4, %s494
        $region60: #{tpu_custom_call.1} parent=55 // pred_fallthru
          _
        // Predicated region
        $region61: #{tpu_custom_call.1} parent=55 // pred_check
          %p496 = pneg %p183
        $region62: #{tpu_custom_call.1} parent=55 // pred_check_branch
          %498 = sbr.rel (%p496) target = $region64
        $region63: #{tpu_custom_call.1} parent=55 // pred_region
          %s499 = smul.u32 2, %s26
          %p500 = scmp.lt.s32.totalorder %s25, 1
          %s501 = scalar_select %p500, %s25, 1
          %p502 = scmp.lt.s32.totalorder %s499, 1
          %s503 = scalar_select %p502, %s499, 1
          %s504 = smul.addr %s501, 2
          %s505 = sadd.s32 %s503, %s504
          %s506 = smul.addr %s505, 4
          %s507 = scalar_lea.vmem %s5, %s506
        $region64: #{tpu_custom_call.1} parent=55 // pred_fallthru
          _
      $region56: #{tpu_custom_call.1} parent=5 // pred_fallthru
        _
    $region6: #{tpu_custom_call.1} parent=1 // loop_footer
      %s18 = sadd.s32 1, %s14
    $region7: #{tpu_custom_call.1} parent=1 // loop_footer_branch
      %13 = sbr.rel target = $region3
    $region8: #{tpu_custom_call.1} parent=1 // loop_exit
      _
    %508 = vsyncpa [#allocation3], 1
    %s509 = scalar_lea.sflag [#allocation3], 1
    %510 = vsyncpa %s509, 1
    %511 = vsyncpa [#allocation5], 1

</llo_original>
